<compile_context>
chip_gen: v7x
topology: tpu7x:2x2x1
jax: 0.10.0
libtpu: 0.0.40
codegen_flags: <defaults>
</compile_context>

<pallas_src>
import functools

import jax
import jax.numpy as jnp
from jax import lax
from jax.experimental import pallas as pl
from jax.experimental.pallas import tpu as pltpu

LANE = 128
CHUNK_ROWS = 128  # (128, 128) f32 chunk = 16 vregs per live temporary


def _max_block_rows():
    """Largest per-core row block that fits the chip's scoped-VMEM default.

    8192 rows -> 4 MiB/tile; 2 inputs x 2 pipeline buffers = 16 MiB, fine for
    v6e/v7x (32 MiB scoped default).  v5e (16 MiB scoped) and unknown chips
    get 4096 rows (8 MiB of double-buffered input tiles).
    """
    try:
        kind = jax.devices()[0].device_kind.lower()
    except Exception:  # pragma: no cover - defensive
        kind = ""
    if "v6" in kind or "v7" in kind:
        return 8192
    return 4096


def _shrinkage_kernel(x_ref, t_ref, o_ref, *, alpha, c, chunk_rows, n_chunks):
    step = pl.program_id(1)  # position along the (per-core) "arbitrary" axis

    # o_ref is this core's (8, 128) partial-sum block; it stays resident in
    # VMEM across the whole inner ("arbitrary") axis and is written back to
    # HBM exactly once, when the core finishes its row range.
    @pl.when(step == 0)
    def _():
        o_ref[...] = jnp.zeros_like(o_ref)

    def chunk_body(j, carry):
        r = pl.multiple_of(j * chunk_rows, chunk_rows)
        # Cast in-kernel: HBM copy stays in the caller's dtype.
        x = x_ref[pl.ds(r, chunk_rows), :].astype(jnp.float32)
        t = t_ref[pl.ds(r, chunk_rows), :].astype(jnp.float32)
        l1 = jnp.abs(x - t)
        # l1^2 * exp(t) / (1 + exp(alpha*(c-l1)))  ==  l1^2 * exp(t) * sigmoid(alpha*(l1-c))
        loss = (l1 * l1) * jnp.exp(t) * jax.nn.sigmoid(alpha * (l1 - c))
        # Reduce the chunk to one (8, 128) vreg with cheap cross-vreg VPU adds;
        # the single expensive cross-lane reduction happens later, in XLA, on
        # only num_cores x (8, 128) elements.
        o_ref[...] += loss.reshape(chunk_rows // 8, 8, LANE).sum(axis=0)
        return carry

    lax.fori_loop(0, n_chunks, chunk_body, 0, unroll=(n_chunks <= 8))


def shrinkage_loss_mean(inputs, targets, alpha: float = 2.0, c: float = 0.2):
    """Pallas implementation of ShrinkageLoss(reduction='mean').forward."""
    assert inputs.shape == targets.shape
    n_total = inputs.size

    x = inputs.reshape(-1)
    t = targets.reshape(-1)

    # Lane-dense slab: rows rounded up to a sublane multiple of 8.
    rows_min = pl.cdiv(n_total, LANE)
    rows_min = pl.cdiv(rows_min, 8) * 8

    # Leading size-2 "parallel" axis: each TensorCore (on v7x) owns half the
    # rows and emits its own (8, 128) partial-sum block.  On 1-TC chips the
    # axis just loops.  Tiny inputs (< 2 sublane groups) stay on one "core".
    num_cores = 2 if rows_min >= 16 else 1
    rows_per_core = pl.cdiv(pl.cdiv(rows_min, num_cores), 8) * 8

    max_block_rows = _max_block_rows()
    if rows_per_core <= CHUNK_ROWS:
        chunk_rows = rows_per_core
        block_rows = rows_per_core
    else:
        chunk_rows = CHUNK_ROWS
        block_rows = min(pl.cdiv(rows_per_core, CHUNK_ROWS) * CHUNK_ROWS,
                         max_block_rows)
    n_chunks = block_rows // chunk_rows
    blocks_per_core = pl.cdiv(rows_per_core, block_rows)
    rows = num_cores * blocks_per_core * block_rows

    pad = rows * LANE - n_total
    if pad:
        # Only taken for ragged sizes (the aligned example needs none).
        # Zero padding (x = t = 0 -> l1 = 0) contributes exactly 0 to the sum
        # and the mean divides by the true n_total.
        # TODO(synk): replace this HBM-copying jnp.pad with in-kernel tail
        # masking (broadcasted_iota of the flat index vs n_total) so ragged
        # sizes stay memory-roofline clean.
        x = jnp.pad(x, (0, pad))
        t = jnp.pad(t, (0, pad))

    x2 = x.reshape(rows, LANE)
    t2 = t.reshape(rows, LANE)

    kernel = functools.partial(
        _shrinkage_kernel,
        alpha=float(alpha),
        c=float(c),
        chunk_rows=chunk_rows,
        n_chunks=n_chunks,
    )

    out = pl.pallas_call(
        kernel,
        out_shape=jax.ShapeDtypeStruct((num_cores * 8, LANE), jnp.float32),
        grid_spec=pltpu.PrefetchScalarGridSpec(
            num_scalar_prefetch=0,
            grid=(num_cores, blocks_per_core),
            in_specs=[
                pl.BlockSpec((block_rows, LANE),
                             lambda cc, i: (cc * blocks_per_core + i, 0)),
                pl.BlockSpec((block_rows, LANE),
                             lambda cc, i: (cc * blocks_per_core + i, 0)),
            ],
            out_specs=pl.BlockSpec((8, LANE), lambda cc, i: (cc, 0)),
        ),
        compiler_params=pltpu.CompilerParams(
            dimension_semantics=("parallel", "arbitrary"),
        ),
    )(x2, t2)

    # Final tiny reduction over num_cores x (8, 128) partials + mean scaling.
    return out.sum() * (1.0 / float(n_total))


def shrinkage_loss_ref(inputs, targets, alpha=2.0, c=0.2):
    l1 = jnp.abs(inputs - targets)
    loss = l1 ** 2 * jnp.exp(targets) / (1.0 + jnp.exp(alpha * (c - l1)))
    return jnp.mean(loss)


if __name__ == "__main__":
    key = jax.random.PRNGKey(0)
    k1, k2 = jax.random.split(key)
    # NCHW-shaped example inputs (predictions / targets)
    inputs = jax.random.normal(k1, (2, 4, 16, 16), dtype=jnp.float32)
    targets = jax.random.uniform(k2, (2, 4, 16, 16), dtype=jnp.float32)

    out = shrinkage_loss_mean(inputs, targets)
    out = jax.block_until_ready(out)

    ref = shrinkage_loss_ref(inputs, targets)
    assert jnp.allclose(out, ref, rtol=1e-5, atol=1e-6), (out, ref)
    print("KERNEL_OK")
</pallas_src>

<mosaic_0001>
module attributes {stable_mosaic.version = 11 : i64} {
  func.func @_shrinkage_kernel(%arg0: i32, %arg1: i32, %arg2: memref<8x128xf32, #tpu.memory_space<vmem>>, %arg3: memref<8x128xf32, #tpu.memory_space<vmem>>, %arg4: memref<8x128xf32, #tpu.memory_space<vmem>>) attributes {dimension_semantics = [#tpu.dimension_semantics<parallel>, #tpu.dimension_semantics<arbitrary>], iteration_bounds = array<i64: 2, 1>, scalar_prefetch = 0 : i64, scratch_operands = 0 : i64, tpu.core_type = #tpu.core_type<tc>, window_params = [{transform_indices = @transform_0, window_bounds = array<i64: 8, 128>}, {transform_indices = @transform_1, window_bounds = array<i64: 8, 128>}, {transform_indices = @transform_2, window_bounds = array<i64: 8, 128>}]} {
    %c0_i32 = arith.constant 0 : i32
    %0 = arith.cmpi eq, %arg1, %c0_i32 : i32
    %1 = arith.extui %0 : i1 to i32
    %c0_i32_0 = arith.constant 0 : i32
    %2 = arith.cmpi ne, %1, %c0_i32_0 : i32
    scf.if %2 {
      %cst_10 = arith.constant 0.000000e+00 : f32
      %29 = vector.broadcast %cst_10 : f32 to vector<8x128xf32>
      %c0_11 = arith.constant 0 : index
      %c0_12 = arith.constant 0 : index
      %30 = vector.load %arg4[%c0_11, %c0_12] : memref<8x128xf32, #tpu.memory_space<vmem>>, vector<8x128xf32>
      tpu.vector_store %arg4[%c0_11, %c0_12], %29 {strides = array<i32>} : memref<8x128xf32, #tpu.memory_space<vmem>>, vector<8x128xf32>,
    } else {
    }
    %c0_i32_1 = arith.constant 0 : i32
    %c8_i32 = arith.constant 8 : i32
    %3 = arith.muli %c0_i32_1, %c8_i32 : i32
    %4 = tpu.assume_multiple %3, 8 : i32
    %5 = arith.index_cast %4 : i32 to index
    %c0 = arith.constant 0 : index
    %6 = vector.load %arg2[%5, %c0] : memref<8x128xf32, #tpu.memory_space<vmem>>, vector<8x128xf32>
    %7 = arith.index_cast %4 : i32 to index
    %c0_2 = arith.constant 0 : index
    %8 = vector.load %arg3[%7, %c0_2] : memref<8x128xf32, #tpu.memory_space<vmem>>, vector<8x128xf32>
    %9 = arith.subf %6, %8 : vector<8x128xf32>
    %10 = math.absf %9 : vector<8x128xf32>
    %11 = arith.mulf %10, %10 : vector<8x128xf32>
    %12 = math.exp %8 : vector<8x128xf32>
    %13 = arith.mulf %11, %12 : vector<8x128xf32>
    %cst = arith.constant 2.000000e-01 : f32
    %14 = vector.broadcast %cst : f32 to vector<8x128xf32>
    %15 = arith.subf %10, %14 : vector<8x128xf32>
    %cst_3 = arith.constant 2.000000e+00 : f32
    %16 = vector.broadcast %cst_3 : f32 to vector<8x128xf32>
    %17 = arith.mulf %16, %15 : vector<8x128xf32>
    %18 = arith.negf %17 : vector<8x128xf32>
    %19 = math.exp %18 : vector<8x128xf32>
    %cst_4 = arith.constant 1.000000e+00 : f32
    %20 = vector.broadcast %cst_4 : f32 to vector<8x128xf32>
    %21 = arith.addf %20, %19 : vector<8x128xf32>
    %22 = arith.divf %20, %21 : vector<8x128xf32>
    %23 = arith.mulf %13, %22 : vector<8x128xf32>
    %c0_5 = arith.constant 0 : index
    %c0_6 = arith.constant 0 : index
    %24 = vector.load %arg4[%c0_5, %c0_6] : memref<8x128xf32, #tpu.memory_space<vmem>>, vector<8x128xf32>
    %25 = vector.shape_cast %23 : vector<8x128xf32> to vector<1x8x128xf32>
    %cst_7 = arith.constant dense<0.000000e+00> : vector<8x128xf32>
    %26 = vector.multi_reduction <add>, %25, %cst_7 [0] : vector<1x8x128xf32> to vector<8x128xf32>
    %27 = arith.addf %24, %26 : vector<8x128xf32>
    %c0_8 = arith.constant 0 : index
    %c0_9 = arith.constant 0 : index
    %28 = vector.load %arg4[%c0_8, %c0_9] : memref<8x128xf32, #tpu.memory_space<vmem>>, vector<8x128xf32>
    tpu.vector_store %arg4[%c0_8, %c0_9], %27 {strides = array<i32>} : memref<8x128xf32, #tpu.memory_space<vmem>>, vector<8x128xf32>,
    %c1_i32 = arith.constant 1 : i32
    return
  }
  func.func @transform_0(%arg0: i32, %arg1: i32) -> (i32, i32) {
    %c1_i32 = arith.constant 1 : i32
    %0 = arith.muli %arg0, %c1_i32 : i32
    %1 = arith.addi %0, %arg1 : i32
    %c0_i32 = arith.constant 0 : i32
    %c0_i32_0 = arith.constant 0 : i32
    return %1, %c0_i32 : i32, i32
  }
  func.func @transform_1(%arg0: i32, %arg1: i32) -> (i32, i32) {
    %c1_i32 = arith.constant 1 : i32
    %0 = arith.muli %arg0, %c1_i32 : i32
    %1 = arith.addi %0, %arg1 : i32
    %c0_i32 = arith.constant 0 : i32
    %c0_i32_0 = arith.constant 0 : i32
    return %1, %c0_i32 : i32, i32
  }
  func.func @transform_2(%arg0: i32, %arg1: i32) -> (i32, i32) {
    %c0_i32 = arith.constant 0 : i32
    %c0_i32_0 = arith.constant 0 : i32
    return %arg0, %c0_i32 : i32, i32
  }
}

</mosaic_0001>

<llo_original>
// kernel: tpu_custom_call.1
$region0: #{tpu_custom_call.1}
  #allocation0 [shape = 'u32[]', space=smem, size = 0x4, offset = 0x4, fixed_abs, tag = 'smem constant byte address 0x4 - core index']
  #allocation1 [shape = 'u32[144,128]{1,0:T(1,128)}', space=vmem, size = 0x12000, scoped, tag = 'internal scratch']
  %s0 = inlined_call_operand.hbm [shape: f32[16,128], index: 0, kind: input, shape index: {}]
  %s1 = inlined_call_operand.hbm [shape: f32[16,128], index: 1, kind: input, shape index: {}]
  %s2 = inlined_call_operand.hbm [shape: f32[16,128], index: 2, kind: output, shape index: {}]
  %s3 = sld [smem:[#allocation0]]
  $region53: #{tpu_custom_call.1} parent=0
    _
  %s5 = ssub.s32 1, %s3
  %s6 = scalar_select 0, %s5, %s3
  $region1: #{tpu_custom_call.1} parent=0
    #allocation2 [shape = 'u8[8192]{0}', space=vmem, size = 0x2000, scoped, tag = 'input window, operand 0']
    #allocation3 [shape = 's32[2]{0}', space=sflag, size = 0x8, scoped, tag = 'scoped memory for tpu_custom_call.1']
    #allocation4 [shape = 's32[2]{0}', space=sflag, size = 0x8, scoped, tag = 'scoped memory for tpu_custom_call.1']
    #allocation5 [shape = 'u8[8192]{0}', space=vmem, size = 0x2000, scoped, tag = 'input window, operand 1']
    #allocation6 [shape = 's32[2]{0}', space=sflag, size = 0x8, scoped, tag = 'scoped memory for tpu_custom_call.1']
    #allocation7 [shape = 'u8[8192]{0}', space=vmem, size = 0x2000, scoped, tag = 'output window, operand 0']
    %7 = vsyncpa [#allocation3], 0
    %s8 = scalar_lea.sflag [#allocation3], 1
    %9 = vsyncpa %s8, 0
    %10 = vsyncpa [#allocation6], 0
    %s11 = scalar_lea.sflag [#allocation6], 1
    %12 = vsyncpa %s11, 0
    %13 = vsyncpa [#allocation4], 0
    %s14 = scalar_lea.sflag [#allocation4], 1
    %15 = vsyncpa %s14, 0
    loop: start=0, step=1, limit=4
    $region2: #{tpu_custom_call.1} parent=1 // loop_pre_header
      _
    $region3: #{tpu_custom_call.1} parent=1 // loop_header
      %s17 = sphi 0, %s21
      %p18 = scmp.ge.s32.totalorder %s17, 4
      %s24 = sphi 0, %s36
      %s25 = sphi 0, %s32
      %s26 = sphi 0, %s24
      %s27 = sphi 0, %s25
      %s28 = sphi 0, %s26
      %s29 = sphi 0, %s27
      %s41 = sphi 0, %s43
      %s44 = sphi 0, %s41
      %s45 = sphi 0, %s44
      %s61 = sphi 0, %s45
      %s69 = sphi 0, %s71
      %s72 = sphi 0, %s69
      %s73 = sphi 0, %s72
      %s89 = sphi 0, %s73
      %s95 = sphi 0, %s97
      %s98 = sphi 0, %s95
      %s99 = sphi 0, %s98
      %s115 = sphi 0, %s99
    $region4: #{tpu_custom_call.1} parent=1 // loop_header_branch
      %20 = sbr.rel (%p18) target = $region8
    $region5: #{tpu_custom_call.1} parent=1 // loop_body
      %s22 = ssub.s32 %s17, 1
      %s23 = ssub.s32 %s17, 2
      %s30 = sadd.s32 1, %s25
      %p31 = scmp.ge.s32.totalorder %s30, 1
      %s32 = scalar_select %p31, 0, %s30
      %s33 = sadd.s32 1, %s24
      %s34 = scalar_select %p31, %s33, %s24
      %p35 = scmp.ge.s32.totalorder %s34, 2
      %s36 = scalar_select %p35, 0, %s34
      %s37 = sadd.s32 %s24, %s25
      %s38 = sadd.s32 %s36, %s32
      %s39 = ssub.s32 %s37, %s38
      %p40 = scmp.eq.s32.totalorder %s39, 0
      %s42 = sadd.s32 %s41, 1
      %s43 = scalar_select %p40, %s41, %s42
      %p46 = pneg %p40
      %p47 = scmp.eq.s32.totalorder %s17, 1
      %p48 = por %p46, %p47
      %p49 = scmp.ne.s32.totalorder %s41, %s44
      %p50 = scmp.eq.s32.totalorder %s17, 0
      %p51 = por %p49, %p50
      %p52 = scmp.ne.s32.totalorder %s41, %s44
      %p53 = scmp.eq.s32.totalorder %s22, 1
      %p54 = por %p52, %p53
      %p55 = scmp.ne.s32.totalorder %s44, %s45
      %p56 = scmp.eq.s32.totalorder %s22, 0
      %p57 = por %p55, %p56
      %p58 = scmp.ne.s32.totalorder %s44, %s45
      %p59 = scmp.eq.s32.totalorder %s23, 1
      %p60 = por %p58, %p59
      %p62 = scmp.ne.s32.totalorder %s45, %s61
      %p63 = scmp.eq.s32.totalorder %s23, 0
      %p64 = por %p62, %p63
      %s65 = sadd.s32 %s24, %s25
      %s66 = sadd.s32 %s36, %s32
      %s67 = ssub.s32 %s65, %s66
      %p68 = scmp.eq.s32.totalorder %s67, 0
      %s70 = sadd.s32 %s69, 1
      %s71 = scalar_select %p68, %s69, %s70
      %p74 = pneg %p68
      %p75 = scmp.eq.s32.totalorder %s17, 1
      %p76 = por %p74, %p75
      %p77 = scmp.ne.s32.totalorder %s69, %s72
      %p78 = scmp.eq.s32.totalorder %s17, 0
      %p79 = por %p77, %p78
      %p80 = scmp.ne.s32.totalorder %s69, %s72
      %p81 = scmp.eq.s32.totalorder %s22, 1
      %p82 = por %p80, %p81
      %p83 = scmp.ne.s32.totalorder %s72, %s73
      %p84 = scmp.eq.s32.totalorder %s22, 0
      %p85 = por %p83, %p84
      %p86 = scmp.ne.s32.totalorder %s72, %s73
      %p87 = scmp.eq.s32.totalorder %s23, 1
      %p88 = por %p86, %p87
      %p90 = scmp.ne.s32.totalorder %s73, %s89
      %p91 = scmp.eq.s32.totalorder %s23, 0
      %p92 = por %p90, %p91
      %s93 = ssub.s32 %s24, %s36
      %p94 = scmp.eq.s32.totalorder %s93, 0
      %s96 = sadd.s32 %s95, 1
      %s97 = scalar_select %p94, %s95, %s96
      %p100 = pneg %p94
      %p101 = scmp.eq.s32.totalorder %s17, 1
      %p102 = por %p100, %p101
      %p103 = scmp.ne.s32.totalorder %s95, %s98
      %p104 = scmp.eq.s32.totalorder %s17, 0
      %p105 = por %p103, %p104
      %p106 = scmp.ne.s32.totalorder %s95, %s98
      %p107 = scmp.eq.s32.totalorder %s22, 1
      %p108 = por %p106, %p107
      %p109 = scmp.ne.s32.totalorder %s98, %s99
      %p110 = scmp.eq.s32.totalorder %s22, 0
      %p111 = por %p109, %p110
      %p112 = scmp.ne.s32.totalorder %s98, %s99
      %p113 = scmp.eq.s32.totalorder %s23, 1
      %p114 = por %p112, %p113
      %p116 = scmp.ne.s32.totalorder %s99, %s115
      %p117 = scmp.eq.s32.totalorder %s23, 0
      %p118 = por %p116, %p117
      %p119 = scmp.le.s32.totalorder 1, %s17
      %p120 = scmp.lt.s32.totalorder %s17, 3
      %p121 = pnand %p119, %p120
      %p122 = pneg %p121
      // Predicated region
      $region9: #{tpu_custom_call.1} parent=5 // pred_check
        _
      $region10: #{tpu_custom_call.1} parent=5 // pred_check_branch
        %124 = sbr.rel (%p121) target = $region12
      $region11: #{tpu_custom_call.1} parent=5 // pred_region
        %s125 = ssub.s32 %s17, 1
      $region12: #{tpu_custom_call.1} parent=5 // pred_fallthru
        _
      %p126 = scmp.lt.s32.totalorder %s17, 2
      // Predicated region
      $region13: #{tpu_custom_call.1} parent=5 // pred_check
        %p127 = pneg %p126
      $region14: #{tpu_custom_call.1} parent=5 // pred_check_branch
        %129 = sbr.rel (%p127) target = $region16
      $region15: #{tpu_custom_call.1} parent=5 // pred_region
        // Predicated region
        $region17: #{tpu_custom_call.1} parent=15 // pred_check
          %p130 = pneg %p51
        $region18: #{tpu_custom_call.1} parent=15 // pred_check_branch
          %132 = sbr.rel (%p130) target = $region20
        $region19: #{tpu_custom_call.1} parent=15 // pred_region
          %s133 = sand.u32 %s41, 1
          %s134 = scalar_lea.sflag [#allocation3], %s133
          %s135 = sand.u32 %s41, 1
          %s136 = smul.addr %s135, 8
          %s137 = scalar_lea.vmem [#allocation2], %s136
          %s138 = sadd.s32 %s24, %s25
          %s140 = ssub.s32 128, 128
          %141 = vsyncadd %s134, %s140
          %s142 = smul.addr %s138, 128
          %s143 = scalar_lea.hbm %s0, %s142
          %s145 = sshll.u32 %s137, 4
          %s146 = int_to_ptr.vmem [resolvable:$true] %s145
          %148 = dma.hbm_to_vmem [thread:$0]  %s143, 128, %s146, %s134
        $region20: #{tpu_custom_call.1} parent=15 // pred_fallthru
          _
        // Predicated region
        $region21: #{tpu_custom_call.1} parent=15 // pred_check
          %p149 = pneg %p79
        $region22: #{tpu_custom_call.1} parent=15 // pred_check_branch
          %151 = sbr.rel (%p149) target = $region24
        $region23: #{tpu_custom_call.1} parent=15 // pred_region
          %s152 = sand.u32 %s69, 1
          %s153 = scalar_lea.sflag [#allocation6], %s152
          %s154 = sand.u32 %s69, 1
          %s155 = smul.addr %s154, 8
          %s156 = scalar_lea.vmem [#allocation5], %s155
          %s157 = sadd.s32 %s24, %s25
          %s159 = ssub.s32 128, 128
          %160 = vsyncadd %s153, %s159
          %s161 = smul.addr %s157, 128
          %s162 = scalar_lea.hbm %s1, %s161
          %s164 = sshll.u32 %s156, 4
          %s165 = int_to_ptr.vmem [resolvable:$true] %s164
          %167 = dma.hbm_to_vmem [thread:$0]  %s162, 128, %s165, %s153
        $region24: #{tpu_custom_call.1} parent=15 // pred_fallthru
          _
      $region16: #{tpu_custom_call.1} parent=5 // pred_fallthru
        _
      %p168 = scmp.le.s32.totalorder 1, %s17
      %p169 = scmp.lt.s32.totalorder %s17, 3
      %p170 = pnand %p168, %p169
      %p171 = pneg %p170
      // Predicated region
      $region25: #{tpu_custom_call.1} parent=5 // pred_check
        _
      $region26: #{tpu_custom_call.1} parent=5 // pred_check_branch
        %173 = sbr.rel (%p170) target = $region28
      $region27: #{tpu_custom_call.1} parent=5 // pred_region
        %s174 = ssub.s32 %s17, 1
        %s175 = sand.u32 %s44, 1
        %s176 = scalar_lea.sflag [#allocation3], %s175
        %s177 = sand.u32 %s44, 1
        %s178 = smul.addr %s177, 8
        %s179 = scalar_lea.vmem [#allocation2], %s178
        // Predicated region
        $region29: #{tpu_custom_call.1} parent=27 // pred_check
          %p180 = pneg %p57
        $region30: #{tpu_custom_call.1} parent=27 // pred_check_branch
          %182 = sbr.rel (%p180) target = $region32
        $region31: #{tpu_custom_call.1} parent=27 // pred_region
          %183 = dma.done %s176, 128
        $region32: #{tpu_custom_call.1} parent=27 // pred_fallthru
          _
        %s184 = sand.u32 %s72, 1
        %s185 = scalar_lea.sflag [#allocation6], %s184
        %s186 = sand.u32 %s72, 1
        %s187 = smul.addr %s186, 8
        %s188 = scalar_lea.vmem [#allocation5], %s187
        // Predicated region
        $region33: #{tpu_custom_call.1} parent=27 // pred_check
          %p189 = pneg %p85
        $region34: #{tpu_custom_call.1} parent=27 // pred_check_branch
          %191 = sbr.rel (%p189) target = $region36
        $region35: #{tpu_custom_call.1} parent=27 // pred_region
          %192 = dma.done %s185, 128
        $region36: #{tpu_custom_call.1} parent=27 // pred_fallthru
          _
        %s193 = sand.u32 %s44, 1
        %s194 = scalar_lea.sflag [#allocation3], %s193
        %s195 = sand.u32 %s44, 1
        %s196 = smul.addr %s195, 8
        %s197 = scalar_lea.vmem [#allocation2], %s196
        %p198 = pneg %p57
        %p199 = pneg %p54
        %s200 = sand.u32 %s72, 1
        %s201 = scalar_lea.sflag [#allocation6], %s200
        %s202 = sand.u32 %s72, 1
        %s203 = smul.addr %s202, 8
        %s204 = scalar_lea.vmem [#allocation5], %s203
        %p205 = pneg %p85
        %p206 = pneg %p82
        %p207 = pneg %p111
        %p208 = pneg %p108
        %s209 = sand.u32 %s98, 1
        %s210 = scalar_lea.sflag [#allocation4], %s209
        %s211 = sand.u32 %s98, 1
        %s212 = smul.addr %s211, 8
        %s213 = scalar_lea.vmem [#allocation7], %s212
        %s214 = sadd.s32 %s26, %s27
        %s215 = sadd.s32 %s26, %s27
        %p216 = scmp.eq.s32.totalorder %s27, 0
        // Predicated region
        $region37: #{tpu_custom_call.1} parent=27 // pred_check
          %p217 = pneg %p216
        $region38: #{tpu_custom_call.1} parent=27 // pred_check_branch
          %219 = sbr.rel (%p217) target = $region40
        $region39: #{tpu_custom_call.1} parent=27 // pred_region
          %220 = vst [vmem:[%s213] sm:$0xff] 0.0
        $region40: #{tpu_custom_call.1} parent=27 // pred_fallthru
          _
        %v221 = vld [vmem:[%s179] sm:$0xff]
        %v222 = vld [vmem:[%s188] sm:$0xff]
        %v223 = vsub.f32 %v221, %v222
        %v224 = vand.u32 2147483647, %v223
        %v225 = vmul.f32 %v224, %v224
        %v226 = vmul.f32 %v222, 1.442695
        %v227 = vpow.pop %v226
        %v228 = vmul.f32 %v225, %v227
        %v229 = vsub.f32 %v224, 0.2
        %v230 = vmul.f32 %v229, 2.0
        %v231 = vxor.u32 %v230, 2147483648
        %v232 = vmul.f32 %v231, 1.442695
        %v233 = vpow.pop %v232
        %v234 = vadd.f32 %v233, 1.0
        %v235 = vrcp.pop %v234
        %v236 = vmul.f32 1.0, %v235
        %v237 = vmul.f32 %v228, %v236
        %v238 = vld [vmem:[%s213] sm:$0xff]
        %v239 = vadd.f32 %v237, 0.0
        %v240 = vadd.f32 %v238, %v239
        %241 = vst [vmem:[%s213] sm:$0xff] %v240
        %s242 = sand.u32 %s98, 1
        %s243 = scalar_lea.sflag [#allocation4], %s242
        %s244 = sand.u32 %s98, 1
        %s245 = smul.addr %s244, 8
        %s246 = scalar_lea.vmem [#allocation7], %s245
        // Predicated region
        $region41: #{tpu_custom_call.1} parent=27 // pred_check
          %p247 = pneg %p108
        $region42: #{tpu_custom_call.1} parent=27 // pred_check_branch
          %249 = sbr.rel (%p247) target = $region44
        $region43: #{tpu_custom_call.1} parent=27 // pred_region
          %s251 = ssub.s32 128, 128
          %252 = vsyncadd %s243, %s251
          %s253 = smul.addr %s26, 128
          %s254 = scalar_lea.hbm %s2, %s253
          %s256 = sshll.u32 %s246, 4
          %s257 = int_to_ptr.vmem [resolvable:$true] %s256
          %259 = dma.vmem_to_hbm [thread:$0]  %s257, 128, %s254, %s243
        $region44: #{tpu_custom_call.1} parent=27 // pred_fallthru
          _
      $region28: #{tpu_custom_call.1} parent=5 // pred_fallthru
        _
      %p260 = scmp.le.s32.totalorder 2, %s17
      // Predicated region
      $region45: #{tpu_custom_call.1} parent=5 // pred_check
        %p261 = pneg %p260
      $region46: #{tpu_custom_call.1} parent=5 // pred_check_branch
        %263 = sbr.rel (%p261) target = $region48
      $region47: #{tpu_custom_call.1} parent=5 // pred_region
        %s264 = ssub.s32 %s17, 2
        // Predicated region
        $region49: #{tpu_custom_call.1} parent=47 // pred_check
          %p265 = pneg %p114
        $region50: #{tpu_custom_call.1} parent=47 // pred_check_branch
          %267 = sbr.rel (%p265) target = $region52
        $region51: #{tpu_custom_call.1} parent=47 // pred_region
          %s268 = sand.u32 %s99, 1
          %s269 = scalar_lea.sflag [#allocation4], %s268
          %s270 = sand.u32 %s99, 1
          %s271 = smul.addr %s270, 8
          %s272 = scalar_lea.vmem [#allocation7], %s271
          %273 = dma.done %s269, 128
        $region52: #{tpu_custom_call.1} parent=47 // pred_fallthru
          _
      $region48: #{tpu_custom_call.1} parent=5 // pred_fallthru
        _
    $region6: #{tpu_custom_call.1} parent=1 // loop_footer
      %s21 = sadd.s32 1, %s17
    $region7: #{tpu_custom_call.1} parent=1 // loop_footer_branch
      %16 = sbr.rel target = $region3
    $region8: #{tpu_custom_call.1} parent=1 // loop_exit
      _
    %274 = vsyncpa [#allocation3], 1
    %s275 = scalar_lea.sflag [#allocation3], 1
    %276 = vsyncpa %s275, 1
    %277 = vsyncpa [#allocation6], 1
    %s278 = scalar_lea.sflag [#allocation6], 1
    %279 = vsyncpa %s278, 1
    %280 = vsyncpa [#allocation4], 1
    %s281 = scalar_lea.sflag [#allocation4], 1
    %282 = vsyncpa %s281, 1

</llo_original>
